<compile_context>
chip_gen: v6e
topology: v6e:2x2x1
jax: 0.10.0
libtpu: 0.0.40
codegen_flags: <defaults>
</compile_context>

<pallas_src>
import math

import jax
import jax.numpy as jnp
from jax import lax
from jax.experimental import pallas as pl
from jax.experimental.pallas import tpu as pltpu

_LANE = 128        # lane width / minimum last-dim alignment
_SUBLANE = 8       # sublane / minimum second-last-dim alignment
_MXU = 256         # MXU width on v6e/v7x; pad N/output dims to this


def _round_up(x, m):
    return ((x + m - 1) // m) * m


def _pad2d(x, rows, cols):
    r, c = x.shape
    if r == rows and c == cols:
        return x
    return jnp.pad(x, ((0, rows - r), (0, cols - c)))


# ---------------------------------------------------------------------------
# Text branch (runs ONCE per forward): Linear -> F.normalize -> * exp(scale),
# emitted pre-transposed as a (D_p, Bt_p) bf16 RHS for the similarity matmul.
# ---------------------------------------------------------------------------
def _text_features_kernel(scale_ref,                 # SMEM (1,)   exp(logit_scale)
                          t_ref, wt_ref, bt_ref,     # (Bt_p,Ht_p) (Ht_p,D_p) (1,D_p)
                          ttfT_ref):                 # (D_p,Bt_p) bf16
    txt = jnp.dot(t_ref[...], wt_ref[...],
                  preferred_element_type=jnp.float32) + bt_ref[...]
    # F.normalize(dim=-1, eps=1e-12)  ==  x * rsqrt(max(sum(x*x), 1e-24))
    txt = txt * lax.rsqrt(
        jnp.maximum(jnp.sum(txt * txt, axis=-1, keepdims=True), 1e-24))
    # exp(logit_scale) folded into the (small, computed-once) text features so
    # the per-image-tile kernel skips a full (tbi, Bt) scaling pass.
    txt = txt * scale_ref[0]
    ttfT_ref[...] = jnp.transpose(txt).astype(ttfT_ref.dtype)


# ---------------------------------------------------------------------------
# Image branch (tiled over the image batch): Linear -> F.normalize -> sim matmul
# against the resident, pre-scaled, pre-transposed text features.
# ---------------------------------------------------------------------------
def _image_logits_kernel(v_ref, wv_ref, bv_ref,      # (tbi,Hv_p) (Hv_p,D_p) (1,D_p)
                         ttfT_ref,                   # (D_p,Bt_p) bf16, resident
                         li_ref):                    # (tbi,Bt_p) f32
    img = jnp.dot(v_ref[...], wv_ref[...],
                  preferred_element_type=jnp.float32) + bv_ref[...]
    img = img * lax.rsqrt(
        jnp.maximum(jnp.sum(img * img, axis=-1, keepdims=True), 1e-24))
    # NOTE: the explicit `x / x.norm()` in forward() is a mathematical no-op on
    # already-normalized rows and is therefore dropped.
    li_ref[...] = jnp.dot(img.astype(jnp.bfloat16), ttfT_ref[...],
                          preferred_element_type=jnp.float32)


# ---------------------------------------------------------------------------
# One-time parameter prep: transpose to (H_in, D), pad, cast weights to bf16.
# ---------------------------------------------------------------------------
def prepare_params(params):
    D, Hv = params["vision_proj_w"].shape
    _, Ht = params["text_proj_w"].shape
    Hv_p = _round_up(Hv, _LANE)
    Ht_p = _round_up(Ht, _LANE)
    D_p = _round_up(D, _MXU)

    wv = _pad2d(params["vision_proj_w"].T.astype(jnp.float32), Hv_p, D_p)
    wt = _pad2d(params["text_proj_w"].T.astype(jnp.float32), Ht_p, D_p)
    return {
        "wv": wv.astype(jnp.bfloat16),
        "wt": wt.astype(jnp.bfloat16),
        "bv": _pad2d(params["vision_proj_b"].reshape(1, -1).astype(jnp.float32), 1, D_p),
        "bt": _pad2d(params["text_proj_b"].reshape(1, -1).astype(jnp.float32), 1, D_p),
        "scale": jnp.exp(params["logit_scale"]).reshape(1).astype(jnp.float32),
        "dims": (Hv, Ht, D, Hv_p, Ht_p, D_p),
    }


def _vmem_budget(tbi, hv_p, d_p, bt_p):
    bytes_needed = (
        2 * tbi * hv_p * 2      # double-buffered bf16 vision tile
        + 2 * tbi * bt_p * 4    # double-buffered f32 output tile
        + hv_p * d_p * 2        # wv (bf16, single-buffered resident)
        + d_p * 4               # bv
        + d_p * bt_p * 2        # scaled text features (bf16, resident)
        + tbi * d_p * 4         # f32 projected-image intermediate
    )
    # 2x headroom for Mosaic scratch; cap under v7x's 64 MiB physical VMEM.
    return int(min(56 * 1024 * 1024, max(8 * 1024 * 1024, 2 * bytes_needed)))


# ---------------------------------------------------------------------------
# Forward: token selection, activation padding, two pallas_calls.
# ---------------------------------------------------------------------------
def custom_clip_forward(prepared, text_last_hidden, vision_last_hidden, *,
                        tile_bi=512):
    Hv, Ht, D, Hv_p, Ht_p, D_p = prepared["dims"]

    # encode_image: CLS token (position 0); encode_text: last token (position -1)
    vision_emb = vision_last_hidden[:, 0, :]
    text_emb = text_last_hidden[:, -1, :]
    Bi = vision_emb.shape[0]
    Bt = text_emb.shape[0]

    # Lane-dense padding: Bt -> 256 multiple (output lane dim / sim-matmul N).
    Bt_p = _round_up(Bt, _MXU)
    Bi_pad8 = _round_up(Bi, _SUBLANE)

    # Pick the image-batch tile.  Ensure >=2 grid steps when the batch allows so
    # the "parallel" axis shards across both TensorCores on v7x.
    tbi = min(tile_bi, Bi_pad8)
    if Bi_pad8 > _SUBLANE and Bi_pad8 <= tbi:
        tbi = _round_up((Bi_pad8 + 1) // 2, _SUBLANE)
    Bi_p = _round_up(Bi_pad8, tbi)

    v = _pad2d(vision_emb.astype(jnp.float32), Bi_p, Hv_p).astype(jnp.bfloat16)
    t = _pad2d(text_emb.astype(jnp.float32), Bt_p, Ht_p).astype(jnp.bfloat16)

    # ---- text features: computed once, pre-scaled, pre-transposed (D_p, Bt_p) ----
    ttfT = pl.pallas_call(
        _text_features_kernel,
        out_shape=jax.ShapeDtypeStruct((D_p, Bt_p), jnp.bfloat16),
        in_specs=[
            pl.BlockSpec(memory_space=pltpu.MemorySpace.SMEM),   # exp(logit_scale)
            pl.BlockSpec(memory_space=pltpu.MemorySpace.VMEM),   # text last-token emb
            pl.BlockSpec(memory_space=pltpu.MemorySpace.VMEM),   # text weight
            pl.BlockSpec(memory_space=pltpu.MemorySpace.VMEM),   # text bias
        ],
        out_specs=pl.BlockSpec(memory_space=pltpu.MemorySpace.VMEM),
    )(prepared["scale"], t, prepared["wt"], prepared["bt"])

    # ---- image projection + normalize + similarity, tiled over image batch ----
    grid = (Bi_p // tbi,)
    resident = pl.Buffered(1)   # constant-index blocks: no 2nd pipeline buffer
    li_pad = pl.pallas_call(
        _image_logits_kernel,
        out_shape=jax.ShapeDtypeStruct((Bi_p, Bt_p), jnp.float32),
        grid=grid,
        in_specs=[
            pl.BlockSpec((tbi, Hv_p), lambda i: (i, 0)),                  # vision CLS tile
            pl.BlockSpec((Hv_p, D_p), lambda i: (0, 0), pipeline_mode=resident),  # wv
            pl.BlockSpec((1, D_p), lambda i: (0, 0), pipeline_mode=resident),     # bv
            pl.BlockSpec((D_p, Bt_p), lambda i: (0, 0), pipeline_mode=resident),  # text^T
        ],
        out_specs=pl.BlockSpec((tbi, Bt_p), lambda i: (i, 0)),
        compiler_params=pltpu.CompilerParams(
            dimension_semantics=("parallel",),
            vmem_limit_bytes=_vmem_budget(tbi, Hv_p, D_p, Bt_p),
        ),
    )(v, prepared["wv"], prepared["bv"], ttfT)

    logits_per_image = li_pad[:Bi, :Bt]
    logits_per_text = logits_per_image.T      # no in-kernel transpose / writeback
    return logits_per_image, logits_per_text


def init_params(key, text_hidden, vision_hidden, embedding_dim):
    k1, k2, k3, k4 = jax.random.split(key, 4)
    # nn.Linear default init: uniform(-1/sqrt(fan_in), 1/sqrt(fan_in))
    bt = 1.0 / math.sqrt(text_hidden)
    bv = 1.0 / math.sqrt(vision_hidden)
    return {
        "text_proj_w": jax.random.uniform(
            k1, (embedding_dim, text_hidden), jnp.float32, -bt, bt),
        "text_proj_b": jax.random.uniform(
            k2, (embedding_dim,), jnp.float32, -bt, bt),
        "vision_proj_w": jax.random.uniform(
            k3, (embedding_dim, vision_hidden), jnp.float32, -bv, bv),
        "vision_proj_b": jax.random.uniform(
            k4, (embedding_dim,), jnp.float32, -bv, bv),
        # logit_scale = log(1/0.07)
        "logit_scale": jnp.array([math.log(1.0 / 0.07)], dtype=jnp.float32),
    }


if __name__ == "__main__":
    key = jax.random.PRNGKey(0)
    k_params, k_text, k_vision = jax.random.split(key, 3)

    batch = 4
    seq = 8
    text_hidden = 32
    vision_hidden = 48
    embedding_dim = 64

    params = init_params(k_params, text_hidden, vision_hidden, embedding_dim)
    prepared = prepare_params(params)

    # Simulated backbone last_hidden_state outputs
    text_last_hidden = jax.random.normal(
        k_text, (batch, seq, text_hidden), dtype=jnp.float32)
    vision_last_hidden = jax.random.normal(
        k_vision, (batch, seq, vision_hidden), dtype=jnp.float32)

    logits_per_image, logits_per_text = custom_clip_forward(
        prepared, text_last_hidden, vision_last_hidden)
    jax.block_until_ready((logits_per_image, logits_per_text))

    # Plain-JAX reference emulating the same bf16-MXU / f32-accumulate policy.
    def ref_forward(params, t, v):
        wv = params["vision_proj_w"].T.astype(jnp.bfloat16)
        wt = params["text_proj_w"].T.astype(jnp.bfloat16)
        ve = jnp.dot(v[:, 0, :].astype(jnp.bfloat16), wv,
                     preferred_element_type=jnp.float32) + params["vision_proj_b"]
        te = jnp.dot(t[:, -1, :].astype(jnp.bfloat16), wt,
                     preferred_element_type=jnp.float32) + params["text_proj_b"]
        ve = ve / jnp.maximum(jnp.linalg.norm(ve, axis=-1, keepdims=True), 1e-12)
        te = te / jnp.maximum(jnp.linalg.norm(te, axis=-1, keepdims=True), 1e-12)
        # second renorm of forward() is a no-op on unit-norm rows
        scale = jnp.exp(params["logit_scale"][0])
        li = jnp.dot(ve.astype(jnp.bfloat16), (scale * te).astype(jnp.bfloat16).T,
                     preferred_element_type=jnp.float32)
        return li, li.T

    ref_li, ref_lt = ref_forward(params, text_last_hidden, vision_last_hidden)
    assert jnp.allclose(logits_per_image, ref_li, atol=2e-2, rtol=2e-2)
    assert jnp.allclose(logits_per_text, ref_lt, atol=2e-2, rtol=2e-2)
    assert logits_per_image.shape == (batch, batch)
    assert logits_per_text.shape == (batch, batch)

    print("KERNEL_OK")
</pallas_src>

<mosaic_0001>
module attributes {stable_mosaic.version = 11 : i64} {
  func.func @_text_features_kernel(%arg0: memref<1xf32, #tpu.memory_space<smem>>, %arg1: memref<256x128xbf16, #tpu.memory_space<vmem>>, %arg2: memref<128x256xbf16, #tpu.memory_space<vmem>>, %arg3: memref<1x256xf32, #tpu.memory_space<vmem>>, %arg4: memref<256x256xbf16, #tpu.memory_space<vmem>>) attributes {dimension_semantics = [], scalar_prefetch = 0 : i64, scratch_operands = 0 : i64, tpu.core_type = #tpu.core_type<tc>} {
    %c0 = arith.constant 0 : index
    %c0_0 = arith.constant 0 : index
    %0 = vector.load %arg1[%c0, %c0_0] : memref<256x128xbf16, #tpu.memory_space<vmem>>, vector<256x128xbf16>
    %c0_1 = arith.constant 0 : index
    %c0_2 = arith.constant 0 : index
    %1 = vector.load %arg2[%c0_1, %c0_2] : memref<128x256xbf16, #tpu.memory_space<vmem>>, vector<128x256xbf16>
    %cst = arith.constant dense<0.000000e+00> : vector<256x256xf32>
    %2 = tpu.matmul %0, %1, %cst {dimension_numbers = #tpu.dot_dimension_numbers<[1], [0], [0], [1], [0, 0, 1, 1], [], []>} : vector<256x128xbf16>, vector<128x256xbf16>, vector<256x256xf32> -> vector<256x256xf32>
    %c0_3 = arith.constant 0 : index
    %c0_4 = arith.constant 0 : index
    %3 = vector.load %arg3[%c0_3, %c0_4] : memref<1x256xf32, #tpu.memory_space<vmem>>, vector<1x256xf32>
    %4 = vector.broadcast %3 : vector<1x256xf32> to vector<256x256xf32>
    %5 = arith.addf %2, %4 : vector<256x256xf32>
    %6 = arith.mulf %5, %5 : vector<256x256xf32>
    %cst_5 = arith.constant dense<0.000000e+00> : vector<256xf32>
    %7 = vector.multi_reduction <add>, %6, %cst_5 [1] : vector<256x256xf32> to vector<256xf32>
    %8 = vector.shape_cast %7 : vector<256xf32> to vector<256x1xf32>
    %cst_6 = arith.constant 1.000000e-24 : f32
    %9 = vector.broadcast %cst_6 : f32 to vector<256x1xf32>
    %10 = arith.maximumf %8, %9 : vector<256x1xf32>
    %11 = math.rsqrt %10 : vector<256x1xf32>
    %12 = vector.broadcast %11 : vector<256x1xf32> to vector<256x256xf32>
    %13 = arith.mulf %5, %12 : vector<256x256xf32>
    %c0_7 = arith.constant 0 : index
    %14 = memref.load %arg0[%c0_7] : memref<1xf32, #tpu.memory_space<smem>>
    %15 = vector.broadcast %14 : f32 to vector<256x256xf32>
    %16 = arith.mulf %13, %15 : vector<256x256xf32>
    %17 = tpu.transpose %16, [1, 0] : vector<256x256xf32> -> vector<256x256xf32>
    %18 = arith.truncf %17 : vector<256x256xf32> to vector<256x256xbf16>
    %c0_8 = arith.constant 0 : index
    %c0_9 = arith.constant 0 : index
    %19 = vector.load %arg4[%c0_8, %c0_9] : memref<256x256xbf16, #tpu.memory_space<vmem>>, vector<256x256xbf16>
    tpu.vector_store %arg4[%c0_8, %c0_9], %18 {strides = array<i32>} : memref<256x256xbf16, #tpu.memory_space<vmem>>, vector<256x256xbf16>,
    return
  }
}

</mosaic_0001>

<llo_original>
// kernel: tpu_custom_call.1
$region0: #{tpu_custom_call.1}
  #allocation0 [shape = 'u32[]', space=smem, size = 0x4, offset = 0x4, fixed_abs, tag = 'smem constant byte address 0x4 - core index']
  #allocation1 [shape = 'u32[144,128]{1,0:T(1,128)}', space=vmem, size = 0x12000, scoped, tag = 'internal scratch']
  #allocation2 [shape = 'f32[1]{0:T(128)S(6)}', space=smem, size = 0x200, scoped, tag = 'scoped memory for tpu_custom_call.1']
  %s0 = inlined_call_operand.<no memory space> [shape: f32[1], index: 0, kind: input, shape index: {}]
  %s1 = inlined_call_operand.hbm [shape: bf16[256,128], index: 1, kind: input, shape index: {}]
  %s2 = inlined_call_operand.hbm [shape: bf16[128,256], index: 2, kind: input, shape index: {}]
  %s3 = inlined_call_operand.vmem [shape: f32[1,256], index: 3, kind: input, shape index: {}]
  %s4 = inlined_call_operand.hbm [shape: bf16[256,256], index: 4, kind: output, shape index: {}]
  %s5 = sld [smem:[#allocation0]]
  $region34: #{tpu_custom_call.1} parent=0
    _
  %s7 = ssub.s32 1, %s5
  %s8 = scalar_select 0, %s7, %s5
  %9 = sst [smem:[#allocation2]] %s0
  $region1: #{tpu_custom_call.1} parent=0
    #allocation3 [shape = 'u8[65536]{0}', space=vmem, size = 0x10000, scoped, tag = 'input window, operand 1, single buffered']
    #allocation4 [shape = 's32[1]{0}', space=sflag, size = 0x4, scoped, tag = 'scoped memory for tpu_custom_call.1']
    #allocation5 [shape = 's32[1]{0}', space=sflag, size = 0x4, scoped, tag = 'scoped memory for tpu_custom_call.1']
    #allocation6 [shape = 'u8[65536]{0}', space=vmem, size = 0x10000, scoped, tag = 'input window, operand 2, single buffered']
    #allocation7 [shape = 's32[1]{0}', space=sflag, size = 0x4, scoped, tag = 'scoped memory for tpu_custom_call.1']
    #allocation8 [shape = 'u8[131072]{0}', space=vmem, size = 0x20000, scoped, tag = 'output window, operand 0, single buffered']
    %10 = vsyncpa [#allocation4], 0
    %11 = vsyncpa [#allocation7], 0
    %12 = vsyncpa [#allocation5], 0
    // Predicated region
    $region2: #{tpu_custom_call.1} parent=1 // pred_check
      _
    $region3: #{tpu_custom_call.1} parent=1 // pred_check_branch
      %14 = sbr.rel (0) target = $region5
    $region4: #{tpu_custom_call.1} parent=1 // pred_region
      _
    $region5: #{tpu_custom_call.1} parent=1 // pred_fallthru
      _
    // Predicated region
    $region6: #{tpu_custom_call.1} parent=1 // pred_check
      _
    $region7: #{tpu_custom_call.1} parent=1 // pred_check_branch
      %16 = sbr.rel (0) target = $region9
    $region8: #{tpu_custom_call.1} parent=1 // pred_region
      %s18 = ssub.s32 2048, 2048
      %19 = vsyncadd [#allocation4], %s18
      %s20 = sshll.u32 [#allocation3], 4
      %s21 = int_to_ptr.vmem [resolvable:$true] %s20
      %26 = dma.hbm_to_vmem [thread:$0]  %s1, 2048, %s21, [#allocation4], 64, 64, 4
    $region9: #{tpu_custom_call.1} parent=1 // pred_fallthru
      _
    // Predicated region
    $region10: #{tpu_custom_call.1} parent=1 // pred_check
      _
    $region11: #{tpu_custom_call.1} parent=1 // pred_check_branch
      %28 = sbr.rel (0) target = $region13
    $region12: #{tpu_custom_call.1} parent=1 // pred_region
      %s30 = ssub.s32 2048, 2048
      %31 = vsyncadd [#allocation7], %s30
      %s32 = sshll.u32 [#allocation6], 4
      %s33 = int_to_ptr.vmem [resolvable:$true] %s32
      %38 = dma.hbm_to_vmem [thread:$0]  %s2, 2048, %s33, [#allocation7], 128, 128, 8
    $region13: #{tpu_custom_call.1} parent=1 // pred_fallthru
      _
    // Predicated region
    $region14: #{tpu_custom_call.1} parent=1 // pred_check
      _
    $region15: #{tpu_custom_call.1} parent=1 // pred_check_branch
      %40 = sbr.rel (0) target = $region17
    $region16: #{tpu_custom_call.1} parent=1 // pred_region
      _
    $region17: #{tpu_custom_call.1} parent=1 // pred_fallthru
      _
    // Predicated region
    $region18: #{tpu_custom_call.1} parent=1 // pred_check
      _
    $region19: #{tpu_custom_call.1} parent=1 // pred_check_branch
      %42 = sbr.rel (0) target = $region21
    $region20: #{tpu_custom_call.1} parent=1 // pred_region
      %43 = dma.done [#allocation4], 2048
    $region21: #{tpu_custom_call.1} parent=1 // pred_fallthru
      _
    // Predicated region
    $region22: #{tpu_custom_call.1} parent=1 // pred_check
      _
    $region23: #{tpu_custom_call.1} parent=1 // pred_check_branch
      %45 = sbr.rel (0) target = $region25
    $region24: #{tpu_custom_call.1} parent=1 // pred_region
      %46 = dma.done [#allocation7], 2048
    $region25: #{tpu_custom_call.1} parent=1 // pred_fallthru
      _
    %v48 = vld [vmem:[#allocation3] sm:$0xf]
    %v49 = vld [vmem:[#allocation3 + $0x4] sm:$0xf]
    %v50 = vld [vmem:[#allocation3 + $0x8] sm:$0xf]
    %v51 = vld [vmem:[#allocation3 + $0xc] sm:$0xf]
    %v52 = vld [vmem:[#allocation3 + $0x10] sm:$0xf]
    %v53 = vld [vmem:[#allocation3 + $0x14] sm:$0xf]
    %v54 = vld [vmem:[#allocation3 + $0x18] sm:$0xf]
    %v55 = vld [vmem:[#allocation3 + $0x1c] sm:$0xf]
    %v56 = vld [vmem:[#allocation3 + $0x20] sm:$0xf]
    %v57 = vld [vmem:[#allocation3 + $0x24] sm:$0xf]
    %v58 = vld [vmem:[#allocation3 + $0x28] sm:$0xf]
    %v59 = vld [vmem:[#allocation3 + $0x2c] sm:$0xf]
    %v60 = vld [vmem:[#allocation3 + $0x30] sm:$0xf]
    %v61 = vld [vmem:[#allocation3 + $0x34] sm:$0xf]
    %v62 = vld [vmem:[#allocation3 + $0x38] sm:$0xf]
    %v63 = vld [vmem:[#allocation3 + $0x3c] sm:$0xf]
    %v64 = vld [vmem:[#allocation3 + $0x40] sm:$0xf]
    %v65 = vld [vmem:[#allocation3 + $0x44] sm:$0xf]
    %v66 = vld [vmem:[#allocation3 + $0x48] sm:$0xf]
    %v67 = vld [vmem:[#allocation3 + $0x4c] sm:$0xf]
    %v68 = vld [vmem:[#allocation3 + $0x50] sm:$0xf]
    %v69 = vld [vmem:[#allocation3 + $0x54] sm:$0xf]
    %v70 = vld [vmem:[#allocation3 + $0x58] sm:$0xf]
    %v71 = vld [vmem:[#allocation3 + $0x5c] sm:$0xf]
    %v72 = vld [vmem:[#allocation3 + $0x60] sm:$0xf]
    %v73 = vld [vmem:[#allocation3 + $0x64] sm:$0xf]
    %v74 = vld [vmem:[#allocation3 + $0x68] sm:$0xf]
    %v75 = vld [vmem:[#allocation3 + $0x6c] sm:$0xf]
    %v76 = vld [vmem:[#allocation3 + $0x70] sm:$0xf]
    %v77 = vld [vmem:[#allocation3 + $0x74] sm:$0xf]
    %v78 = vld [vmem:[#allocation3 + $0x78] sm:$0xf]
    %v79 = vld [vmem:[#allocation3 + $0x7c] sm:$0xf]
    %v80 = vld [vmem:[#allocation6] sm:$0xff]
    %v81 = vld [vmem:[#allocation6 + $0x8] sm:$0xff]
    %v82 = vld [vmem:[#allocation6 + $0x10] sm:$0xff]
    %v83 = vld [vmem:[#allocation6 + $0x18] sm:$0xff]
    %v84 = vld [vmem:[#allocation6 + $0x20] sm:$0xff]
    %v85 = vld [vmem:[#allocation6 + $0x28] sm:$0xff]
    %v86 = vld [vmem:[#allocation6 + $0x30] sm:$0xff]
    %v87 = vld [vmem:[#allocation6 + $0x38] sm:$0xff]
    %v88 = vld [vmem:[#allocation6 + $0x40] sm:$0xff]
    %v89 = vld [vmem:[#allocation6 + $0x48] sm:$0xff]
    %v90 = vld [vmem:[#allocation6 + $0x50] sm:$0xff]
    %v91 = vld [vmem:[#allocation6 + $0x58] sm:$0xff]
    %v92 = vld [vmem:[#allocation6 + $0x60] sm:$0xff]
    %v93 = vld [vmem:[#allocation6 + $0x68] sm:$0xff]
    %v94 = vld [vmem:[#allocation6 + $0x70] sm:$0xff]
    %v95 = vld [vmem:[#allocation6 + $0x78] sm:$0xff]
    %v96 = vld [vmem:[%s3] sm:$0x3]
    %v98 = vlaneseq
    %v99 = vshrl.u32 %v98, 7
    %v100 = vsub.s32 0, %v99
    %v101 = vrot.slane %v96, %v100
    %v102 = vlaneseq
    %v103 = vshrl.u32 %v102, 7
    %v104 = vsub.s32 1, %v103
    %v105 = vrot.slane %v96, %v104
    %v140 = vunpack.c.l.b16 %v48
    %v141 = vunpack.c.l.b16 %v49
    %v142 = vunpack.c.l.b16 %v50
    %v143 = vunpack.c.l.b16 %v51
    %v144 = vunpack.c.l.b16 %v52
    %v145 = vunpack.c.l.b16 %v53
    %v146 = vunpack.c.l.b16 %v54
    %v147 = vunpack.c.l.b16 %v55
    %v148 = vunpack.c.l.b16 %v56
    %v149 = vunpack.c.l.b16 %v57
    %v150 = vunpack.c.l.b16 %v58
    %v151 = vunpack.c.l.b16 %v59
    %v152 = vunpack.c.l.b16 %v60
    %v153 = vunpack.c.l.b16 %v61
    %v154 = vunpack.c.l.b16 %v62
    %v155 = vunpack.c.l.b16 %v63
    %v156 = vunpack.c.l.b16 %v64
    %v157 = vunpack.c.l.b16 %v65
    %v158 = vunpack.c.l.b16 %v66
    %v159 = vunpack.c.l.b16 %v67
    %v160 = vunpack.c.l.b16 %v68
    %v161 = vunpack.c.l.b16 %v69
    %v162 = vunpack.c.l.b16 %v70
    %v163 = vunpack.c.l.b16 %v71
    %v164 = vunpack.c.l.b16 %v72
    %v165 = vunpack.c.l.b16 %v73
    %v166 = vunpack.c.l.b16 %v74
    %v167 = vunpack.c.l.b16 %v75
    %v168 = vunpack.c.l.b16 %v76
    %v169 = vunpack.c.l.b16 %v77
    %v170 = vunpack.c.l.b16 %v78
    %v171 = vunpack.c.l.b16 %v79
    %v172 = vpack.c.b16 %v141, %v140
    %v173 = vpack.c.b16 %v143, %v142
    %v174 = vpack.c.b16 %v145, %v144
    %v175 = vpack.c.b16 %v147, %v146
    %v176 = vpack.c.b16 %v149, %v148
    %v177 = vpack.c.b16 %v151, %v150
    %v178 = vpack.c.b16 %v153, %v152
    %v179 = vpack.c.b16 %v155, %v154
    %v180 = vpack.c.b16 %v157, %v156
    %v181 = vpack.c.b16 %v159, %v158
    %v182 = vpack.c.b16 %v161, %v160
    %v183 = vpack.c.b16 %v163, %v162
    %v184 = vpack.c.b16 %v165, %v164
    %v185 = vpack.c.b16 %v167, %v166
    %v186 = vpack.c.b16 %v169, %v168
    %v187 = vpack.c.b16 %v171, %v170
    %v220 = vunpack.c.l.b16 %v80
    %v221 = vunpack.c.h.b16 %v80
    %v222 = vunpack.c.l.b16 %v81
    %v223 = vunpack.c.h.b16 %v81
    %v224 = vunpack.c.l.b16 %v82
    %v225 = vunpack.c.h.b16 %v82
    %v226 = vunpack.c.l.b16 %v83
    %v227 = vunpack.c.h.b16 %v83
    %v228 = vunpack.c.l.b16 %v84
    %v229 = vunpack.c.h.b16 %v84
    %v230 = vunpack.c.l.b16 %v85
    %v231 = vunpack.c.h.b16 %v85
    %v232 = vunpack.c.l.b16 %v86
    %v233 = vunpack.c.h.b16 %v86
    %v234 = vunpack.c.l.b16 %v87
    %v235 = vunpack.c.h.b16 %v87
    %v236 = vunpack.c.l.b16 %v88
    %v237 = vunpack.c.h.b16 %v88
    %v238 = vunpack.c.l.b16 %v89
    %v239 = vunpack.c.h.b16 %v89
    %v240 = vunpack.c.l.b16 %v90
    %v241 = vunpack.c.h.b16 %v90
    %v242 = vunpack.c.l.b16 %v91
    %v243 = vunpack.c.h.b16 %v91
    %v244 = vunpack.c.l.b16 %v92
    %v245 = vunpack.c.h.b16 %v92
    %v246 = vunpack.c.l.b16 %v93
    %v247 = vunpack.c.h.b16 %v93
    %v248 = vunpack.c.l.b16 %v94
    %v249 = vunpack.c.h.b16 %v94
    %v250 = vunpack.c.l.b16 %v95
    %v251 = vunpack.c.h.b16 %v95
    %v252 = vpack.c.b16 %v222, %v220
    %v253 = vpack.c.b16 %v223, %v221
    %v254 = vpack.c.b16 %v226, %v224
    %v255 = vpack.c.b16 %v227, %v225
    %v256 = vpack.c.b16 %v230, %v228
    %v257 = vpack.c.b16 %v231, %v229
    %v258 = vpack.c.b16 %v234, %v232
    %v259 = vpack.c.b16 %v235, %v233
    %v260 = vpack.c.b16 %v238, %v236
    %v261 = vpack.c.b16 %v239, %v237
    %v262 = vpack.c.b16 %v242, %v240
    %v263 = vpack.c.b16 %v243, %v241
    %v264 = vpack.c.b16 %v246, %v244
    %v265 = vpack.c.b16 %v247, %v245
    %v266 = vpack.c.b16 %v250, %v248
    %v267 = vpack.c.b16 %v251, %v249
    %284 = vmatprep.subr.bf16.mxu0 %v267
    %285 = vmatpush1.bf16.msra.mxu0 %v266
    %286 = vmatprep.subr.bf16.mxu0 %v265
    %287 = vmatpush1.bf16.msra.mxu0 %v264
    %288 = vmatprep.subr.bf16.mxu0 %v263
    %289 = vmatpush1.bf16.msra.mxu0 %v262
    %290 = vmatprep.subr.bf16.mxu0 %v261
    %291 = vmatpush1.bf16.msra.mxu0 %v260
    %292 = vmatprep.subr.bf16.mxu0 %v259
    %293 = vmatpush1.bf16.msra.mxu0 %v258
    %294 = vmatprep.subr.bf16.mxu0 %v257
    %295 = vmatpush1.bf16.msra.mxu0 %v256
    %296 = vmatprep.subr.bf16.mxu0 %v255
    %297 = vmatpush1.bf16.msra.mxu0 %v254
    %298 = vmatprep.subr.bf16.mxu0 %v253
    %299 = vmatpush1.bf16.msra.mxu0 %v252
    %300 = vmatprep.subr.bf16.mxu0 0
    %301 = vmatpush2.bf16.msra.mxu0 0
    %302 = vmatprep.subr.bf16.mxu0 0
    %303 = vmatpush2.bf16.msra.mxu0 0
    %304 = vmatprep.subr.bf16.mxu0 0
    %305 = vmatpush2.bf16.msra.mxu0 0
    %306 = vmatprep.subr.bf16.mxu0 0
    %307 = vmatpush2.bf16.msra.mxu0 0
    %308 = vmatprep.subr.bf16.mxu0 0
    %309 = vmatpush2.bf16.msra.mxu0 0
    %310 = vmatprep.subr.bf16.mxu0 0
    %311 = vmatpush2.bf16.msra.mxu0 0
    %312 = vmatprep.subr.bf16.mxu0 0
    %313 = vmatpush2.bf16.msra.mxu0 0
    %314 = vmatprep.subr.bf16.mxu0 0
    %315 = vmatpush2.bf16.msra.mxu0 0
    %316 = vmatprep.mubr.bf16.mxu0 0
    %317 = vmatmul.mubr.bf16.gmra.mxu0 %v172
    %v318 = vpop.f32.mrf.mxu0
    %v319 = vadd.f32 %v101, %v318
    %v320 = vpop.f32.mrf.mxu0
    %v321 = vadd.f32 %v105, %v320
    %v322 = vpop.f32.mrf.mxu0
    %v323 = vadd.f32 %v101, %v322
    %v324 = vpop.f32.mrf.mxu0
    %v325 = vadd.f32 %v105, %v324
    %326 = vmatprep.mubr.bf16.mxu0 0
    %327 = vmatmul.mubr.bf16.gmra.mxu0 %v173
    %v328 = vpop.f32.mrf.mxu0
    %v329 = vadd.f32 %v101, %v328
    %v330 = vpop.f32.mrf.mxu0
    %v331 = vadd.f32 %v105, %v330
    %v332 = vpop.f32.mrf.mxu0
    %v333 = vadd.f32 %v101, %v332
    %v334 = vpop.f32.mrf.mxu0
    %v335 = vadd.f32 %v105, %v334
    %336 = vmatprep.mubr.bf16.mxu0 0
    %337 = vmatmul.mubr.bf16.gmra.mxu0 %v174
    %v338 = vpop.f32.mrf.mxu0
    %v339 = vadd.f32 %v101, %v338
    %v340 = vpop.f32.mrf.mxu0
    %v341 = vadd.f32 %v105, %v340
    %v342 = vpop.f32.mrf.mxu0
    %v343 = vadd.f32 %v101, %v342
    %v344 = vpop.f32.mrf.mxu0
    %v345 = vadd.f32 %v105, %v344
    %346 = vmatprep.mubr.bf16.mxu0 0
    %347 = vmatmul.mubr.bf16.gmra.mxu0 %v175
    %v348 = vpop.f32.mrf.mxu0
    %v349 = vadd.f32 %v101, %v348
    %v350 = vpop.f32.mrf.mxu0
    %v351 = vadd.f32 %v105, %v350
    %v352 = vpop.f32.mrf.mxu0
    %v353 = vadd.f32 %v101, %v352
    %v354 = vpop.f32.mrf.mxu0
    %v355 = vadd.f32 %v105, %v354
    %356 = vmatprep.mubr.bf16.mxu0 0
    %357 = vmatmul.mubr.bf16.gmra.mxu0 %v176
    %v358 = vpop.f32.mrf.mxu0
    %v359 = vadd.f32 %v101, %v358
    %v360 = vpop.f32.mrf.mxu0
    %v361 = vadd.f32 %v105, %v360
    %v362 = vpop.f32.mrf.mxu0
    %v363 = vadd.f32 %v101, %v362
    %v364 = vpop.f32.mrf.mxu0
    %v365 = vadd.f32 %v105, %v364
    %366 = vmatprep.mubr.bf16.mxu0 0
    %367 = vmatmul.mubr.bf16.gmra.mxu0 %v177
    %v368 = vpop.f32.mrf.mxu0
    %v369 = vadd.f32 %v101, %v368
    %v370 = vpop.f32.mrf.mxu0
    %v371 = vadd.f32 %v105, %v370
    %v372 = vpop.f32.mrf.mxu0
    %v373 = vadd.f32 %v101, %v372
    %v374 = vpop.f32.mrf.mxu0
    %v375 = vadd.f32 %v105, %v374
    %376 = vmatprep.mubr.bf16.mxu0 0
    %377 = vmatmul.mubr.bf16.gmra.mxu0 %v178
    %v378 = vpop.f32.mrf.mxu0
    %v379 = vadd.f32 %v101, %v378
    %v380 = vpop.f32.mrf.mxu0
    %v381 = vadd.f32 %v105, %v380
    %v382 = vpop.f32.mrf.mxu0
    %v383 = vadd.f32 %v101, %v382
    %v384 = vpop.f32.mrf.mxu0
    %v385 = vadd.f32 %v105, %v384
    %386 = vmatprep.mubr.bf16.mxu0 0
    %387 = vmatmul.mubr.bf16.gmra.mxu0 %v179
    %v388 = vpop.f32.mrf.mxu0
    %v389 = vadd.f32 %v101, %v388
    %v390 = vpop.f32.mrf.mxu0
    %v391 = vadd.f32 %v105, %v390
    %v392 = vpop.f32.mrf.mxu0
    %v393 = vadd.f32 %v101, %v392
    %v394 = vpop.f32.mrf.mxu0
    %v395 = vadd.f32 %v105, %v394
    %396 = vmatprep.mubr.bf16.mxu0 0
    %397 = vmatmul.mubr.bf16.gmra.mxu0 %v180
    %v398 = vpop.f32.mrf.mxu0
    %v399 = vadd.f32 %v101, %v398
    %v400 = vpop.f32.mrf.mxu0
    %v401 = vadd.f32 %v105, %v400
    %v402 = vpop.f32.mrf.mxu0
    %v403 = vadd.f32 %v101, %v402
    %v404 = vpop.f32.mrf.mxu0
    %v405 = vadd.f32 %v105, %v404
    %406 = vmatprep.mubr.bf16.mxu0 0
    %407 = vmatmul.mubr.bf16.gmra.mxu0 %v181
    %v408 = vpop.f32.mrf.mxu0
    %v409 = vadd.f32 %v101, %v408
    %v410 = vpop.f32.mrf.mxu0
    %v411 = vadd.f32 %v105, %v410
    %v412 = vpop.f32.mrf.mxu0
    %v413 = vadd.f32 %v101, %v412
    %v414 = vpop.f32.mrf.mxu0
    %v415 = vadd.f32 %v105, %v414
    %416 = vmatprep.mubr.bf16.mxu0 0
    %417 = vmatmul.mubr.bf16.gmra.mxu0 %v182
    %v418 = vpop.f32.mrf.mxu0
    %v419 = vadd.f32 %v101, %v418
    %v420 = vpop.f32.mrf.mxu0
    %v421 = vadd.f32 %v105, %v420
    %v422 = vpop.f32.mrf.mxu0
    %v423 = vadd.f32 %v101, %v422
    %v424 = vpop.f32.mrf.mxu0
    %v425 = vadd.f32 %v105, %v424
    %426 = vmatprep.mubr.bf16.mxu0 0
    %427 = vmatmul.mubr.bf16.gmra.mxu0 %v183
    %v428 = vpop.f32.mrf.mxu0
    %v429 = vadd.f32 %v101, %v428
    %v430 = vpop.f32.mrf.mxu0
    %v431 = vadd.f32 %v105, %v430
    %v432 = vpop.f32.mrf.mxu0
    %v433 = vadd.f32 %v101, %v432
    %v434 = vpop.f32.mrf.mxu0
    %v435 = vadd.f32 %v105, %v434
    %436 = vmatprep.mubr.bf16.mxu0 0
    %437 = vmatmul.mubr.bf16.gmra.mxu0 %v184
    %v438 = vpop.f32.mrf.mxu0
    %v439 = vadd.f32 %v101, %v438
    %v440 = vpop.f32.mrf.mxu0
    %v441 = vadd.f32 %v105, %v440
    %v442 = vpop.f32.mrf.mxu0
    %v443 = vadd.f32 %v101, %v442
    %v444 = vpop.f32.mrf.mxu0
    %v445 = vadd.f32 %v105, %v444
    %446 = vmatprep.mubr.bf16.mxu0 0
    %447 = vmatmul.mubr.bf16.gmra.mxu0 %v185
    %v448 = vpop.f32.mrf.mxu0
    %v449 = vadd.f32 %v101, %v448
    %v450 = vpop.f32.mrf.mxu0
    %v451 = vadd.f32 %v105, %v450
    %v452 = vpop.f32.mrf.mxu0
    %v453 = vadd.f32 %v101, %v452
    %v454 = vpop.f32.mrf.mxu0
    %v455 = vadd.f32 %v105, %v454
    %456 = vmatprep.mubr.bf16.mxu0 0
    %457 = vmatmul.mubr.bf16.gmra.mxu0 %v186
    %v458 = vpop.f32.mrf.mxu0
    %v459 = vadd.f32 %v101, %v458
    %v460 = vpop.f32.mrf.mxu0
    %v461 = vadd.f32 %v105, %v460
    %v462 = vpop.f32.mrf.mxu0
    %v463 = vadd.f32 %v101, %v462
    %v464 = vpop.f32.mrf.mxu0
    %v465 = vadd.f32 %v105, %v464
    %466 = vmatprep.mubr.bf16.mxu0 0
    %467 = vmatmul.mubr.bf16.gmra.mxu0 %v187
    %v468 = vpop.f32.mrf.mxu0
    %v469 = vadd.f32 %v101, %v468
    %v470 = vpop.f32.mrf.mxu0
    %v471 = vadd.f32 %v105, %v470
    %v472 = vpop.f32.mrf.mxu0
    %v473 = vadd.f32 %v101, %v472
    %v474 = vpop.f32.mrf.mxu0
    %v475 = vadd.f32 %v105, %v474
    %476 = vdwg.mxu0
    %v477 = vmul.f32 %v319, %v319
    %v478 = vmul.f32 %v321, %v321
    %v479 = vmul.f32 %v323, %v323
    %v480 = vmul.f32 %v325, %v325
    %v481 = vmul.f32 %v329, %v329
    %v482 = vmul.f32 %v331, %v331
    %v483 = vmul.f32 %v333, %v333
    %v484 = vmul.f32 %v335, %v335
    %v485 = vmul.f32 %v339, %v339
    %v486 = vmul.f32 %v341, %v341
    %v487 = vmul.f32 %v343, %v343
    %v488 = vmul.f32 %v345, %v345
    %v489 = vmul.f32 %v349, %v349
    %v490 = vmul.f32 %v351, %v351
    %v491 = vmul.f32 %v353, %v353
    %v492 = vmul.f32 %v355, %v355
    %v493 = vmul.f32 %v359, %v359
    %v494 = vmul.f32 %v361, %v361
    %v495 = vmul.f32 %v363, %v363
    %v496 = vmul.f32 %v365, %v365
    %v497 = vmul.f32 %v369, %v369
    %v498 = vmul.f32 %v371, %v371
    %v499 = vmul.f32 %v373, %v373
    %v500 = vmul.f32 %v375, %v375
    %v501 = vmul.f32 %v379, %v379
    %v502 = vmul.f32 %v381, %v381
    %v503 = vmul.f32 %v383, %v383
    %v504 = vmul.f32 %v385, %v385
    %v505 = vmul.f32 %v389, %v389
    %v506 = vmul.f32 %v391, %v391
    %v507 = vmul.f32 %v393, %v393
    %v508 = vmul.f32 %v395, %v395
    %v509 = vmul.f32 %v399, %v399
    %v510 = vmul.f32 %v401, %v401
    %v511 = vmul.f32 %v403, %v403
    %v512 = vmul.f32 %v405, %v405
    %v513 = vmul.f32 %v409, %v409
    %v514 = vmul.f32 %v411, %v411
    %v515 = vmul.f32 %v413, %v413
    %v516 = vmul.f32 %v415, %v415
    %v517 = vmul.f32 %v419, %v419
    %v518 = vmul.f32 %v421, %v421
    %v519 = vmul.f32 %v423, %v423
    %v520 = vmul.f32 %v425, %v425
    %v521 = vmul.f32 %v429, %v429
    %v522 = vmul.f32 %v431, %v431
    %v523 = vmul.f32 %v433, %v433
    %v524 = vmul.f32 %v435, %v435
    %v525 = vmul.f32 %v439, %v439
    %v526 = vmul.f32 %v441, %v441
    %v527 = vmul.f32 %v443, %v443
    %v528 = vmul.f32 %v445, %v445
    %v529 = vmul.f32 %v449, %v449
    %v530 = vmul.f32 %v451, %v451
    %v531 = vmul.f32 %v453, %v453
    %v532 = vmul.f32 %v455, %v455
    %v533 = vmul.f32 %v459, %v459
    %v534 = vmul.f32 %v461, %v461
    %v535 = vmul.f32 %v463, %v463
    %v536 = vmul.f32 %v465, %v465
    %v537 = vmul.f32 %v469, %v469
    %v538 = vmul.f32 %v471, %v471
    %v539 = vmul.f32 %v473, %v473
    %v540 = vmul.f32 %v475, %v475
    %v541 = vadd.f32 %v477, %v478
    %542 = vadd.xlane.f32.xlu0 %v541
    %v543 = vpop.xlane.xlu0 %542
    %v544 = vadd.f32 %v479, %v480
    %545 = vadd.xlane.f32.xlu0 %v544
    %v546 = vpop.xlane.xlu0 %545
    %v547 = vadd.f32 %v481, %v482
    %548 = vadd.xlane.f32.xlu0 %v547
    %v549 = vpop.xlane.xlu0 %548
    %v550 = vadd.f32 %v483, %v484
    %551 = vadd.xlane.f32.xlu0 %v550
    %v552 = vpop.xlane.xlu0 %551
    %v553 = vadd.f32 %v485, %v486
    %554 = vadd.xlane.f32.xlu0 %v553
    %v555 = vpop.xlane.xlu0 %554
    %v556 = vadd.f32 %v487, %v488
    %557 = vadd.xlane.f32.xlu0 %v556
    %v558 = vpop.xlane.xlu0 %557
    %v559 = vadd.f32 %v489, %v490
    %560 = vadd.xlane.f32.xlu0 %v559
    %v561 = vpop.xlane.xlu0 %560
    %v562 = vadd.f32 %v491, %v492
    %563 = vadd.xlane.f32.xlu0 %v562
    %v564 = vpop.xlane.xlu0 %563
    %v565 = vadd.f32 %v493, %v494
    %566 = vadd.xlane.f32.xlu0 %v565
    %v567 = vpop.xlane.xlu0 %566
    %v568 = vadd.f32 %v495, %v496
    %569 = vadd.xlane.f32.xlu0 %v568
    %v570 = vpop.xlane.xlu0 %569
    %v571 = vadd.f32 %v497, %v498
    %572 = vadd.xlane.f32.xlu0 %v571
    %v573 = vpop.xlane.xlu0 %572
    %v574 = vadd.f32 %v499, %v500
    %575 = vadd.xlane.f32.xlu0 %v574
    %v576 = vpop.xlane.xlu0 %575
    %v577 = vadd.f32 %v501, %v502
    %578 = vadd.xlane.f32.xlu0 %v577
    %v579 = vpop.xlane.xlu0 %578
    %v580 = vadd.f32 %v503, %v504
    %581 = vadd.xlane.f32.xlu0 %v580
    %v582 = vpop.xlane.xlu0 %581
    %v583 = vadd.f32 %v505, %v506
    %584 = vadd.xlane.f32.xlu0 %v583
    %v585 = vpop.xlane.xlu0 %584
    %v586 = vadd.f32 %v507, %v508
    %587 = vadd.xlane.f32.xlu0 %v586
    %v588 = vpop.xlane.xlu0 %587
    %v589 = vadd.f32 %v509, %v510
    %590 = vadd.xlane.f32.xlu0 %v589
    %v591 = vpop.xlane.xlu0 %590
    %v592 = vadd.f32 %v511, %v512
    %593 = vadd.xlane.f32.xlu0 %v592
    %v594 = vpop.xlane.xlu0 %593
    %v595 = vadd.f32 %v513, %v514
    %596 = vadd.xlane.f32.xlu0 %v595
    %v597 = vpop.xlane.xlu0 %596
    %v598 = vadd.f32 %v515, %v516
    %599 = vadd.xlane.f32.xlu0 %v598
    %v600 = vpop.xlane.xlu0 %599
    %v601 = vadd.f32 %v517, %v518
    %602 = vadd.xlane.f32.xlu0 %v601
    %v603 = vpop.xlane.xlu0 %602
    %v604 = vadd.f32 %v519, %v520
    %605 = vadd.xlane.f32.xlu0 %v604
    %v606 = vpop.xlane.xlu0 %605
    %v607 = vadd.f32 %v521, %v522
    %608 = vadd.xlane.f32.xlu0 %v607
    %v609 = vpop.xlane.xlu0 %608
    %v610 = vadd.f32 %v523, %v524
    %611 = vadd.xlane.f32.xlu0 %v610
    %v612 = vpop.xlane.xlu0 %611
    %v613 = vadd.f32 %v525, %v526
    %614 = vadd.xlane.f32.xlu0 %v613
    %v615 = vpop.xlane.xlu0 %614
    %v616 = vadd.f32 %v527, %v528
    %617 = vadd.xlane.f32.xlu0 %v616
    %v618 = vpop.xlane.xlu0 %617
    %v619 = vadd.f32 %v529, %v530
    %620 = vadd.xlane.f32.xlu0 %v619
    %v621 = vpop.xlane.xlu0 %620
    %v622 = vadd.f32 %v531, %v532
    %623 = vadd.xlane.f32.xlu0 %v622
    %v624 = vpop.xlane.xlu0 %623
    %v625 = vadd.f32 %v533, %v534
    %626 = vadd.xlane.f32.xlu0 %v625
    %v627 = vpop.xlane.xlu0 %626
    %v628 = vadd.f32 %v535, %v536
    %629 = vadd.xlane.f32.xlu0 %v628
    %v630 = vpop.xlane.xlu0 %629
    %v631 = vadd.f32 %v537, %v538
    %632 = vadd.xlane.f32.xlu0 %v631
    %v633 = vpop.xlane.xlu0 %632
    %v634 = vadd.f32 %v539, %v540
    %635 = vadd.xlane.f32.xlu0 %v634
    %v636 = vpop.xlane.xlu0 %635
    %v637 = vmax.f32 %v543, 1e-24
    %v638 = vmax.f32 %v546, 1e-24
    %v639 = vmax.f32 %v549, 1e-24
    %v640 = vmax.f32 %v552, 1e-24
    %v641 = vmax.f32 %v555, 1e-24
    %v642 = vmax.f32 %v558, 1e-24
    %v643 = vmax.f32 %v561, 1e-24
    %v644 = vmax.f32 %v564, 1e-24
    %v645 = vmax.f32 %v567, 1e-24
    %v646 = vmax.f32 %v570, 1e-24
    %v647 = vmax.f32 %v573, 1e-24
    %v648 = vmax.f32 %v576, 1e-24
    %v649 = vmax.f32 %v579, 1e-24
    %v650 = vmax.f32 %v582, 1e-24
    %v651 = vmax.f32 %v585, 1e-24
    %v652 = vmax.f32 %v588, 1e-24
    %v653 = vmax.f32 %v591, 1e-24
    %v654 = vmax.f32 %v594, 1e-24
    %v655 = vmax.f32 %v597, 1e-24
    %v656 = vmax.f32 %v600, 1e-24
    %v657 = vmax.f32 %v603, 1e-24
    %v658 = vmax.f32 %v606, 1e-24
    %v659 = vmax.f32 %v609, 1e-24
    %v660 = vmax.f32 %v612, 1e-24
    %v661 = vmax.f32 %v615, 1e-24
    %v662 = vmax.f32 %v618, 1e-24
    %v663 = vmax.f32 %v621, 1e-24
    %v664 = vmax.f32 %v624, 1e-24
    %v665 = vmax.f32 %v627, 1e-24
    %v666 = vmax.f32 %v630, 1e-24
    %v667 = vmax.f32 %v633, 1e-24
    %v668 = vmax.f32 %v636, 1e-24
    %v669 = vrsqrt.pop %v637
    %v670 = vrsqrt.pop %v638
    %v671 = vrsqrt.pop %v639
    %v672 = vrsqrt.pop %v640
    %v673 = vrsqrt.pop %v641
    %v674 = vrsqrt.pop %v642
    %v675 = vrsqrt.pop %v643
    %v676 = vrsqrt.pop %v644
    %v677 = vrsqrt.pop %v645
    %v678 = vrsqrt.pop %v646
    %v679 = vrsqrt.pop %v647
    %v680 = vrsqrt.pop %v648
    %v681 = vrsqrt.pop %v649
    %v682 = vrsqrt.pop %v650
    %v683 = vrsqrt.pop %v651
    %v684 = vrsqrt.pop %v652
    %v685 = vrsqrt.pop %v653
    %v686 = vrsqrt.pop %v654
    %v687 = vrsqrt.pop %v655
    %v688 = vrsqrt.pop %v656
    %v689 = vrsqrt.pop %v657
    %v690 = vrsqrt.pop %v658
    %v691 = vrsqrt.pop %v659
    %v692 = vrsqrt.pop %v660
    %v693 = vrsqrt.pop %v661
    %v694 = vrsqrt.pop %v662
    %v695 = vrsqrt.pop %v663
    %v696 = vrsqrt.pop %v664
    %v697 = vrsqrt.pop %v665
    %v698 = vrsqrt.pop %v666
    %v699 = vrsqrt.pop %v667
    %v700 = vrsqrt.pop %v668
    %v701 = vmul.f32 %v319, %v669
    %v702 = vmul.f32 %v321, %v669
    %v703 = vmul.f32 %v323, %v670
    %v704 = vmul.f32 %v325, %v670
    %v705 = vmul.f32 %v329, %v671
    %v706 = vmul.f32 %v331, %v671
    %v707 = vmul.f32 %v333, %v672
    %v708 = vmul.f32 %v335, %v672
    %v709 = vmul.f32 %v339, %v673
    %v710 = vmul.f32 %v341, %v673
    %v711 = vmul.f32 %v343, %v674
    %v712 = vmul.f32 %v345, %v674
    %v713 = vmul.f32 %v349, %v675
    %v714 = vmul.f32 %v351, %v675
    %v715 = vmul.f32 %v353, %v676
    %v716 = vmul.f32 %v355, %v676
    %v717 = vmul.f32 %v359, %v677
    %v718 = vmul.f32 %v361, %v677
    %v719 = vmul.f32 %v363, %v678
    %v720 = vmul.f32 %v365, %v678
    %v721 = vmul.f32 %v369, %v679
    %v722 = vmul.f32 %v371, %v679
    %v723 = vmul.f32 %v373, %v680
    %v724 = vmul.f32 %v375, %v680
    %v725 = vmul.f32 %v379, %v681
    %v726 = vmul.f32 %v381, %v681
    %v727 = vmul.f32 %v383, %v682
    %v728 = vmul.f32 %v385, %v682
    %v729 = vmul.f32 %v389, %v683
    %v730 = vmul.f32 %v391, %v683
    %v731 = vmul.f32 %v393, %v684
    %v732 = vmul.f32 %v395, %v684
    %v733 = vmul.f32 %v399, %v685
    %v734 = vmul.f32 %v401, %v685
    %v735 = vmul.f32 %v403, %v686
    %v736 = vmul.f32 %v405, %v686
    %v737 = vmul.f32 %v409, %v687
    %v738 = vmul.f32 %v411, %v687
    %v739 = vmul.f32 %v413, %v688
    %v740 = vmul.f32 %v415, %v688
    %v741 = vmul.f32 %v419, %v689
    %v742 = vmul.f32 %v421, %v689
    %v743 = vmul.f32 %v423, %v690
    %v744 = vmul.f32 %v425, %v690
    %v745 = vmul.f32 %v429, %v691
    %v746 = vmul.f32 %v431, %v691
    %v747 = vmul.f32 %v433, %v692
    %v748 = vmul.f32 %v435, %v692
    %v749 = vmul.f32 %v439, %v693
    %v750 = vmul.f32 %v441, %v693
    %v751 = vmul.f32 %v443, %v694
    %v752 = vmul.f32 %v445, %v694
    %v753 = vmul.f32 %v449, %v695
    %v754 = vmul.f32 %v451, %v695
    %v755 = vmul.f32 %v453, %v696
    %v756 = vmul.f32 %v455, %v696
    %v757 = vmul.f32 %v459, %v697
    %v758 = vmul.f32 %v461, %v697
    %v759 = vmul.f32 %v463, %v698
    %v760 = vmul.f32 %v465, %v698
    %v761 = vmul.f32 %v469, %v699
    %v762 = vmul.f32 %v471, %v699
    %v763 = vmul.f32 %v473, %v700
    %v764 = vmul.f32 %v475, %v700
    %s765 = sld [smem:[#allocation2]]
    %v766 = vstv %s765
    %v767 = vmul.f32 %v701, %v766
    %v768 = vmul.f32 %v702, %v766
    %v769 = vmul.f32 %v703, %v766
    %v770 = vmul.f32 %v704, %v766
    %v771 = vmul.f32 %v705, %v766
    %v772 = vmul.f32 %v706, %v766
    %v773 = vmul.f32 %v707, %v766
    %v774 = vmul.f32 %v708, %v766
    %v775 = vmul.f32 %v709, %v766
    %v776 = vmul.f32 %v710, %v766
    %v777 = vmul.f32 %v711, %v766
    %v778 = vmul.f32 %v712, %v766
    %v779 = vmul.f32 %v713, %v766
    %v780 = vmul.f32 %v714, %v766
    %v781 = vmul.f32 %v715, %v766
    %v782 = vmul.f32 %v716, %v766
    %v783 = vmul.f32 %v717, %v766
    %v784 = vmul.f32 %v718, %v766
    %v785 = vmul.f32 %v719, %v766
    %v786 = vmul.f32 %v720, %v766
    %v787 = vmul.f32 %v721, %v766
    %v788 = vmul.f32 %v722, %v766
    %v789 = vmul.f32 %v723, %v766
    %v790 = vmul.f32 %v724, %v766
    %v791 = vmul.f32 %v725, %v766
    %v792 = vmul.f32 %v726, %v766
    %v793 = vmul.f32 %v727, %v766
    %v794 = vmul.f32 %v728, %v766
    %v795 = vmul.f32 %v729, %v766
    %v796 = vmul.f32 %v730, %v766
    %v797 = vmul.f32 %v731, %v766
    %v798 = vmul.f32 %v732, %v766
    %v799 = vmul.f32 %v733, %v766
    %v800 = vmul.f32 %v734, %v766
    %v801 = vmul.f32 %v735, %v766
    %v802 = vmul.f32 %v736, %v766
    %v803 = vmul.f32 %v737, %v766
    %v804 = vmul.f32 %v738, %v766
    %v805 = vmul.f32 %v739, %v766
    %v806 = vmul.f32 %v740, %v766
    %v807 = vmul.f32 %v741, %v766
    %v808 = vmul.f32 %v742, %v766
    %v809 = vmul.f32 %v743, %v766
    %v810 = vmul.f32 %v744, %v766
    %v811 = vmul.f32 %v745, %v766
    %v812 = vmul.f32 %v746, %v766
    %v813 = vmul.f32 %v747, %v766
    %v814 = vmul.f32 %v748, %v766
    %v815 = vmul.f32 %v749, %v766
    %v816 = vmul.f32 %v750, %v766
    %v817 = vmul.f32 %v751, %v766
    %v818 = vmul.f32 %v752, %v766
    %v819 = vmul.f32 %v753, %v766
    %v820 = vmul.f32 %v754, %v766
    %v821 = vmul.f32 %v755, %v766
    %v822 = vmul.f32 %v756, %v766
    %v823 = vmul.f32 %v757, %v766
    %v824 = vmul.f32 %v758, %v766
    %v825 = vmul.f32 %v759, %v766
    %v826 = vmul.f32 %v760, %v766
    %v827 = vmul.f32 %v761, %v766
    %v828 = vmul.f32 %v762, %v766
    %v829 = vmul.f32 %v763, %v766
    %v830 = vmul.f32 %v764, %v766
    %831 = vxpose.xlu0.b32.start [1/16] %v767, 128
    %832 = vxpose.xlu0.b32.cont [2/16] %v769, 128
    %833 = vxpose.xlu0.b32.cont [3/16] %v771, 128
    %834 = vxpose.xlu0.b32.cont [4/16] %v773, 128
    %835 = vxpose.xlu0.b32.cont [5/16] %v775, 128
    %836 = vxpose.xlu0.b32.cont [6/16] %v777, 128
    %837 = vxpose.xlu0.b32.cont [7/16] %v779, 128
    %838 = vxpose.xlu0.b32.cont [8/16] %v781, 128
    %839 = vxpose.xlu0.b32.cont [9/16] %v783, 128
    %840 = vxpose.xlu0.b32.cont [10/16] %v785, 128
    %841 = vxpose.xlu0.b32.cont [11/16] %v787, 128
    %842 = vxpose.xlu0.b32.cont [12/16] %v789, 128
    %843 = vxpose.xlu0.b32.cont [13/16] %v791, 128
    %844 = vxpose.xlu0.b32.cont [14/16] %v793, 128
    %845 = vxpose.xlu0.b32.cont [15/16] %v795, 128
    %846 = vxpose.xlu0.b32.end [16/16] %v797, 128
    %v847 = vpop.trf.xlu0
    %v848 = vpop.trf.xlu0
    %v849 = vpop.trf.xlu0
    %v850 = vpop.trf.xlu0
    %v851 = vpop.trf.xlu0
    %v852 = vpop.trf.xlu0
    %v853 = vpop.trf.xlu0
    %v854 = vpop.trf.xlu0
    %v855 = vpop.trf.xlu0
    %v856 = vpop.trf.xlu0
    %v857 = vpop.trf.xlu0
    %v858 = vpop.trf.xlu0
    %v859 = vpop.trf.xlu0
    %v860 = vpop.trf.xlu0
    %v861 = vpop.trf.xlu0
    %v862 = vpop.trf.xlu0
    %863 = vxpose.xlu0.b32.start [1/16] %v768, 128
    %864 = vxpose.xlu0.b32.cont [2/16] %v770, 128
    %865 = vxpose.xlu0.b32.cont [3/16] %v772, 128
    %866 = vxpose.xlu0.b32.cont [4/16] %v774, 128
    %867 = vxpose.xlu0.b32.cont [5/16] %v776, 128
    %868 = vxpose.xlu0.b32.cont [6/16] %v778, 128
    %869 = vxpose.xlu0.b32.cont [7/16] %v780, 128
    %870 = vxpose.xlu0.b32.cont [8/16] %v782, 128
    %871 = vxpose.xlu0.b32.cont [9/16] %v784, 128
    %872 = vxpose.xlu0.b32.cont [10/16] %v786, 128
    %873 = vxpose.xlu0.b32.cont [11/16] %v788, 128
    %874 = vxpose.xlu0.b32.cont [12/16] %v790, 128
    %875 = vxpose.xlu0.b32.cont [13/16] %v792, 128
    %876 = vxpose.xlu0.b32.cont [14/16] %v794, 128
    %877 = vxpose.xlu0.b32.cont [15/16] %v796, 128
    %878 = vxpose.xlu0.b32.end [16/16] %v798, 128
    %v879 = vpop.trf.xlu0
    %v880 = vpop.trf.xlu0
    %v881 = vpop.trf.xlu0
    %v882 = vpop.trf.xlu0
    %v883 = vpop.trf.xlu0
    %v884 = vpop.trf.xlu0
    %v885 = vpop.trf.xlu0
    %v886 = vpop.trf.xlu0
    %v887 = vpop.trf.xlu0
    %v888 = vpop.trf.xlu0
    %v889 = vpop.trf.xlu0
    %v890 = vpop.trf.xlu0
    %v891 = vpop.trf.xlu0
    %v892 = vpop.trf.xlu0
    %v893 = vpop.trf.xlu0
    %v894 = vpop.trf.xlu0
    %895 = vxpose.xlu0.b32.start [1/16] %v799, 128
    %896 = vxpose.xlu0.b32.cont [2/16] %v801, 128
    %897 = vxpose.xlu0.b32.cont [3/16] %v803, 128
    %898 = vxpose.xlu0.b32.cont [4/16] %v805, 128
    %899 = vxpose.xlu0.b32.cont [5/16] %v807, 128
    %900 = vxpose.xlu0.b32.cont [6/16] %v809, 128
    %901 = vxpose.xlu0.b32.cont [7/16] %v811, 128
    %902 = vxpose.xlu0.b32.cont [8/16] %v813, 128
    %903 = vxpose.xlu0.b32.cont [9/16] %v815, 128
    %904 = vxpose.xlu0.b32.cont [10/16] %v817, 128
    %905 = vxpose.xlu0.b32.cont [11/16] %v819, 128
    %906 = vxpose.xlu0.b32.cont [12/16] %v821, 128
    %907 = vxpose.xlu0.b32.cont [13/16] %v823, 128
    %908 = vxpose.xlu0.b32.cont [14/16] %v825, 128
    %909 = vxpose.xlu0.b32.cont [15/16] %v827, 128
    %910 = vxpose.xlu0.b32.end [16/16] %v829, 128
    %v911 = vpop.trf.xlu0
    %v912 = vpop.trf.xlu0
    %v913 = vpop.trf.xlu0
    %v914 = vpop.trf.xlu0
    %v915 = vpop.trf.xlu0
    %v916 = vpop.trf.xlu0
    %v917 = vpop.trf.xlu0
    %v918 = vpop.trf.xlu0
    %v919 = vpop.trf.xlu0
    %v920 = vpop.trf.xlu0
    %v921 = vpop.trf.xlu0
    %v922 = vpop.trf.xlu0
    %v923 = vpop.trf.xlu0
    %v924 = vpop.trf.xlu0
    %v925 = vpop.trf.xlu0
    %v926 = vpop.trf.xlu0
    %927 = vxpose.xlu0.b32.start [1/16] %v800, 128
    %928 = vxpose.xlu0.b32.cont [2/16] %v802, 128
    %929 = vxpose.xlu0.b32.cont [3/16] %v804, 128
    %930 = vxpose.xlu0.b32.cont [4/16] %v806, 128
    %931 = vxpose.xlu0.b32.cont [5/16] %v808, 128
    %932 = vxpose.xlu0.b32.cont [6/16] %v810, 128
    %933 = vxpose.xlu0.b32.cont [7/16] %v812, 128
    %934 = vxpose.xlu0.b32.cont [8/16] %v814, 128
    %935 = vxpose.xlu0.b32.cont [9/16] %v816, 128
    %936 = vxpose.xlu0.b32.cont [10/16] %v818, 128
    %937 = vxpose.xlu0.b32.cont [11/16] %v820, 128
    %938 = vxpose.xlu0.b32.cont [12/16] %v822, 128
    %939 = vxpose.xlu0.b32.cont [13/16] %v824, 128
    %940 = vxpose.xlu0.b32.cont [14/16] %v826, 128
    %941 = vxpose.xlu0.b32.cont [15/16] %v828, 128
    %942 = vxpose.xlu0.b32.end [16/16] %v830, 128
    %v943 = vpop.trf.xlu0
    %v944 = vpop.trf.xlu0
    %v945 = vpop.trf.xlu0
    %v946 = vpop.trf.xlu0
    %v947 = vpop.trf.xlu0
    %v948 = vpop.trf.xlu0
    %v949 = vpop.trf.xlu0
    %v950 = vpop.trf.xlu0
    %v951 = vpop.trf.xlu0
    %v952 = vpop.trf.xlu0
    %v953 = vpop.trf.xlu0
    %v954 = vpop.trf.xlu0
    %v955 = vpop.trf.xlu0
    %v956 = vpop.trf.xlu0
    %v957 = vpop.trf.xlu0
    %v958 = vpop.trf.xlu0
    %v959 = vpack.c.bf16 %v848, %v847
    %v960 = vpack.c.bf16 %v912, %v911
    %v961 = vpack.c.bf16 %v850, %v849
    %v962 = vpack.c.bf16 %v914, %v913
    %v963 = vpack.c.bf16 %v852, %v851
    %v964 = vpack.c.bf16 %v916, %v915
    %v965 = vpack.c.bf16 %v854, %v853
    %v966 = vpack.c.bf16 %v918, %v917
    %v967 = vpack.c.bf16 %v856, %v855
    %v968 = vpack.c.bf16 %v920, %v919
    %v969 = vpack.c.bf16 %v858, %v857
    %v970 = vpack.c.bf16 %v922, %v921
    %v971 = vpack.c.bf16 %v860, %v859
    %v972 = vpack.c.bf16 %v924, %v923
    %v973 = vpack.c.bf16 %v862, %v861
    %v974 = vpack.c.bf16 %v926, %v925
    %v975 = vpack.c.bf16 %v880, %v879
    %v976 = vpack.c.bf16 %v944, %v943
    %v977 = vpack.c.bf16 %v882, %v881
    %v978 = vpack.c.bf16 %v946, %v945
    %v979 = vpack.c.bf16 %v884, %v883
    %v980 = vpack.c.bf16 %v948, %v947
    %v981 = vpack.c.bf16 %v886, %v885
    %v982 = vpack.c.bf16 %v950, %v949
    %v983 = vpack.c.bf16 %v888, %v887
    %v984 = vpack.c.bf16 %v952, %v951
    %v985 = vpack.c.bf16 %v890, %v889
    %v986 = vpack.c.bf16 %v954, %v953
    %v987 = vpack.c.bf16 %v892, %v891
    %v988 = vpack.c.bf16 %v956, %v955
    %v989 = vpack.c.bf16 %v894, %v893
    %v990 = vpack.c.bf16 %v958, %v957
    %v1023 = vunpack.c.l.b16 %v959
    %v1024 = vunpack.c.l.b16 %v960
    %v1025 = vunpack.c.h.b16 %v959
    %v1026 = vunpack.c.h.b16 %v960
    %v1027 = vunpack.c.l.b16 %v961
    %v1028 = vunpack.c.l.b16 %v962
    %v1029 = vunpack.c.h.b16 %v961
    %v1030 = vunpack.c.h.b16 %v962
    %v1031 = vunpack.c.l.b16 %v963
    %v1032 = vunpack.c.l.b16 %v964
    %v1033 = vunpack.c.h.b16 %v963
    %v1034 = vunpack.c.h.b16 %v964
    %v1035 = vunpack.c.l.b16 %v965
    %v1036 = vunpack.c.l.b16 %v966
    %v1037 = vunpack.c.h.b16 %v965
    %v1038 = vunpack.c.h.b16 %v966
    %v1039 = vunpack.c.l.b16 %v967
    %v1040 = vunpack.c.l.b16 %v968
    %v1041 = vunpack.c.h.b16 %v967
    %v1042 = vunpack.c.h.b16 %v968
    %v1043 = vunpack.c.l.b16 %v969
    %v1044 = vunpack.c.l.b16 %v970
    %v1045 = vunpack.c.h.b16 %v969
    %v1046 = vunpack.c.h.b16 %v970
    %v1047 = vunpack.c.l.b16 %v971
    %v1048 = vunpack.c.l.b16 %v972
    %v1049 = vunpack.c.h.b16 %v971
    %v1050 = vunpack.c.h.b16 %v972
    %v1051 = vunpack.c.l.b16 %v973
    %v1052 = vunpack.c.l.b16 %v974
    %v1053 = vunpack.c.h.b16 %v973
    %v1054 = vunpack.c.h.b16 %v974
    %v1055 = vunpack.c.l.b16 %v975
    %v1056 = vunpack.c.l.b16 %v976
    %v1057 = vunpack.c.h.b16 %v975
    %v1058 = vunpack.c.h.b16 %v976
    %v1059 = vunpack.c.l.b16 %v977
    %v1060 = vunpack.c.l.b16 %v978
    %v1061 = vunpack.c.h.b16 %v977
    %v1062 = vunpack.c.h.b16 %v978
    %v1063 = vunpack.c.l.b16 %v979
    %v1064 = vunpack.c.l.b16 %v980
    %v1065 = vunpack.c.h.b16 %v979
    %v1066 = vunpack.c.h.b16 %v980
    %v1067 = vunpack.c.l.b16 %v981
    %v1068 = vunpack.c.l.b16 %v982
    %v1069 = vunpack.c.h.b16 %v981
    %v1070 = vunpack.c.h.b16 %v982
    %v1071 = vunpack.c.l.b16 %v983
    %v1072 = vunpack.c.l.b16 %v984
    %v1073 = vunpack.c.h.b16 %v983
    %v1074 = vunpack.c.h.b16 %v984
    %v1075 = vunpack.c.l.b16 %v985
    %v1076 = vunpack.c.l.b16 %v986
    %v1077 = vunpack.c.h.b16 %v985
    %v1078 = vunpack.c.h.b16 %v986
    %v1079 = vunpack.c.l.b16 %v987
    %v1080 = vunpack.c.l.b16 %v988
    %v1081 = vunpack.c.h.b16 %v987
    %v1082 = vunpack.c.h.b16 %v988
    %v1083 = vunpack.c.l.b16 %v989
    %v1084 = vunpack.c.l.b16 %v990
    %v1085 = vunpack.c.h.b16 %v989
    %v1086 = vunpack.c.h.b16 %v990
    %v1087 = vpack.c.b16 %v1024, %v1023
    %v1088 = vpack.c.b16 %v1026, %v1025
    %v1089 = vpack.c.b16 %v1028, %v1027
    %v1090 = vpack.c.b16 %v1030, %v1029
    %v1091 = vpack.c.b16 %v1032, %v1031
    %v1092 = vpack.c.b16 %v1034, %v1033
    %v1093 = vpack.c.b16 %v1036, %v1035
    %v1094 = vpack.c.b16 %v1038, %v1037
    %v1095 = vpack.c.b16 %v1040, %v1039
    %v1096 = vpack.c.b16 %v1042, %v1041
    %v1097 = vpack.c.b16 %v1044, %v1043
    %v1098 = vpack.c.b16 %v1046, %v1045
    %v1099 = vpack.c.b16 %v1048, %v1047
    %v1100 = vpack.c.b16 %v1050, %v1049
    %v1101 = vpack.c.b16 %v1052, %v1051
    %v1102 = vpack.c.b16 %v1054, %v1053
    %v1103 = vpack.c.b16 %v1056, %v1055
    %v1104 = vpack.c.b16 %v1058, %v1057
    %v1105 = vpack.c.b16 %v1060, %v1059
    %v1106 = vpack.c.b16 %v1062, %v1061
    %v1107 = vpack.c.b16 %v1064, %v1063
    %v1108 = vpack.c.b16 %v1066, %v1065
    %v1109 = vpack.c.b16 %v1068, %v1067
    %v1110 = vpack.c.b16 %v1070, %v1069
    %v1111 = vpack.c.b16 %v1072, %v1071
    %v1112 = vpack.c.b16 %v1074, %v1073
    %v1113 = vpack.c.b16 %v1076, %v1075
    %v1114 = vpack.c.b16 %v1078, %v1077
    %v1115 = vpack.c.b16 %v1080, %v1079
    %v1116 = vpack.c.b16 %v1082, %v1081
    %v1117 = vpack.c.b16 %v1084, %v1083
    %v1118 = vpack.c.b16 %v1086, %v1085
    %1151 = vst [vmem:[#allocation8] sm:$0xff] %v1087
    %1152 = vst [vmem:[#allocation8 + $0x8] sm:$0xff] %v1088
    %1153 = vst [vmem:[#allocation8 + $0x10] sm:$0xff] %v1089
    %1154 = vst [vmem:[#allocation8 + $0x18] sm:$0xff] %v1090
    %1155 = vst [vmem:[#allocation8 + $0x20] sm:$0xff] %v1091
    %1156 = vst [vmem:[#allocation8 + $0x28] sm:$0xff] %v1092
    %1157 = vst [vmem:[#allocation8 + $0x30] sm:$0xff] %v1093
    %1158 = vst [vmem:[#allocation8 + $0x38] sm:$0xff] %v1094
    %1159 = vst [vmem:[#allocation8 + $0x40] sm:$0xff] %v1095
    %1160 = vst [vmem:[#allocation8 + $0x48] sm:$0xff] %v1096
    %1161 = vst [vmem:[#allocation8 + $0x50] sm:$0xff] %v1097
    %1162 = vst [vmem:[#allocation8 + $0x58] sm:$0xff] %v1098
    %1163 = vst [vmem:[#allocation8 + $0x60] sm:$0xff] %v1099
    %1164 = vst [vmem:[#allocation8 + $0x68] sm:$0xff] %v1100
    %1165 = vst [vmem:[#allocation8 + $0x70] sm:$0xff] %v1101
    %1166 = vst [vmem:[#allocation8 + $0x78] sm:$0xff] %v1102
    %1167 = vst [vmem:[#allocation8 + $0x80] sm:$0xff] %v1103
    %1168 = vst [vmem:[#allocation8 + $0x88] sm:$0xff] %v1104
    %1169 = vst [vmem:[#allocation8 + $0x90] sm:$0xff] %v1105
    %1170 = vst [vmem:[#allocation8 + $0x98] sm:$0xff] %v1106
    %1171 = vst [vmem:[#allocation8 + $0xa0] sm:$0xff] %v1107
    %1172 = vst [vmem:[#allocation8 + $0xa8] sm:$0xff] %v1108
    %1173 = vst [vmem:[#allocation8 + $0xb0] sm:$0xff] %v1109
    %1174 = vst [vmem:[#allocation8 + $0xb8] sm:$0xff] %v1110
    %1175 = vst [vmem:[#allocation8 + $0xc0] sm:$0xff] %v1111
    %1176 = vst [vmem:[#allocation8 + $0xc8] sm:$0xff] %v1112
    %1177 = vst [vmem:[#allocation8 + $0xd0] sm:$0xff] %v1113
    %1178 = vst [vmem:[#allocation8 + $0xd8] sm:$0xff] %v1114
    %1179 = vst [vmem:[#allocation8 + $0xe0] sm:$0xff] %v1115
    %1180 = vst [vmem:[#allocation8 + $0xe8] sm:$0xff] %v1116
    %1181 = vst [vmem:[#allocation8 + $0xf0] sm:$0xff] %v1117
    %1182 = vst [vmem:[#allocation8 + $0xf8] sm:$0xff] %v1118
    // Predicated region
    $region26: #{tpu_custom_call.1} parent=1 // pred_check
      _
    $region27: #{tpu_custom_call.1} parent=1 // pred_check_branch
      %1184 = sbr.rel (0) target = $region29
    $region28: #{tpu_custom_call.1} parent=1 // pred_region
      %s1186 = ssub.s32 4096, 4096
      %1187 = vsyncadd [#allocation5], %s1186
      %s1188 = sshll.u32 [#allocation8], 4
      %s1189 = int_to_ptr.vmem [resolvable:$true] %s1188
      %1194 = dma.vmem_to_hbm [thread:$0]  %s1189, 4096, %s4, [#allocation5], 128, 128, 8
    $region29: #{tpu_custom_call.1} parent=1 // pred_fallthru
      _
    // Predicated region
    $region30: #{tpu_custom_call.1} parent=1 // pred_check
      _
    $region31: #{tpu_custom_call.1} parent=1 // pred_check_branch
      %1196 = sbr.rel (0) target = $region33
    $region32: #{tpu_custom_call.1} parent=1 // pred_region
      %1197 = dma.done [#allocation5], 4096
    $region33: #{tpu_custom_call.1} parent=1 // pred_fallthru
      _
    %1198 = vsyncpa [#allocation4], 1
    %1199 = vsyncpa [#allocation7], 1
    %1200 = vsyncpa [#allocation5], 1

</llo_original>
